<compile_context>
chip_gen: v7x
topology: tpu7x:2x2x1
jax: 0.10.0
libtpu: 0.0.40
codegen_flags: <defaults>
</compile_context>

<pallas_src>
import jax
import jax.numpy as jnp
from jax.experimental import pallas as pl
from jax.experimental.pallas import tpu as pltpu

_LANE = 128


def _cdiv(a: int, b: int) -> int:
    return -(-a // b)


def _round_up(a: int, b: int) -> int:
    return _cdiv(a, b) * b


def _chip_tuning():
    """Best-effort chip query: (tensorcores_per_chip, target_block_bytes)."""
    cores = 1
    vmem_cap = 128 << 20
    try:
        info = pltpu.get_tpu_info()
        vmem_cap = int(getattr(info, "vmem_capacity_bytes", vmem_cap) or vmem_cap)
        for name in ("num_tensorcores", "tensorcore_count", "num_cores",
                     "cores_per_chip"):
            v = getattr(info, name, None)
            if v:
                cores = max(cores, int(v))
                break
    except Exception:
        pass
    if cores == 1:
        try:
            kind = jax.devices()[0].device_kind.lower()
            if "7" in kind:  # v7x: 2 TensorCores per chip
                cores = 2
        except Exception:
            pass
    # v7x (64 MiB VMEM, ~3.2 TB/s HBM) wants bigger blocks so the ~0.35 us
    # per-grid-step overhead stays <10% of the DMA time; 4 MiB blocks are
    # already >=85% of roofline on v5e/v6e.
    is_v7x = cores >= 2 or vmem_cap <= (64 << 20)
    target_block_bytes = (8 << 20) if is_v7x else (4 << 20)
    return cores, target_block_bytes


def _scale_kernel(scale_ref, x_ref, o_ref):
    # scale_ref: SMEM (1,) f32; x_ref / o_ref: (block_rows, 128) VMEM tiles.
    # Multiply in f32 (PyTorch promotes to the f32 parameter's dtype for the
    # compute, then the in-place op casts back to x's dtype).
    o_ref[...] = (x_ref[...] * scale_ref[0]).astype(o_ref.dtype)


def _jax_scale(x: jax.Array, scale_f32: jax.Array) -> jax.Array:
    # Single fused XLA pass, same numerics as the kernel (f32 mul, cast back).
    return (x.astype(jnp.float32) * scale_f32).astype(x.dtype)


def scaling_operator(x: jax.Array, scale: jax.Array, *,
                     min_pallas_bytes: int = 128 * 1024) -> jax.Array:
    """y = x * scale  (scale is a 0-d / scalar learnable f32 parameter)."""
    orig_shape = x.shape
    dtype = x.dtype
    itemsize = jnp.dtype(dtype).itemsize
    n = int(x.size)
    scale_f32 = jnp.asarray(scale, dtype=jnp.float32)

    if n == 0:
        return x

    # Tiny tensors: pallas_call launch overhead dominates; XLA's fused scalar
    # multiply is already at roofline there.
    if n * itemsize < min_pallas_bytes:
        return _jax_scale(x, scale_f32)

    # Ragged flat size (tail < one 128-lane tile): a single-pass XLA multiply
    # beats any pad / slice / concat plumbing (each of those adds a full HBM
    # read+write pass to a purely bandwidth-bound op).
    # TODO(synk): an in-kernel masked ragged-tail path would keep this in
    # Pallas without the extra passes.
    if n % _LANE != 0:
        return _jax_scale(x, scale_f32)

    total_rows = n // _LANE
    x2d = x.reshape(total_rows, _LANE)  # row-major reshape: no data movement

    num_cores, target_block_bytes = _chip_tuning()

    # Dtype-aware sublane packing: 8 rows (f32), 16 (bf16), 32 (int8/fp8).
    sublane = max(8, 32 // itemsize)
    max_block_rows = max(
        sublane, (target_block_bytes // (_LANE * itemsize)) // sublane * sublane
    )
    block_rows = min(max_block_rows, _round_up(total_rows, sublane))
    num_blocks = _cdiv(total_rows, block_rows)

    if num_cores >= 2 and total_rows > sublane:
        # Even number of grid steps so the "parallel" axis splits evenly
        # across both TensorCores. Skipped entirely on 1-TC chips where the
        # grid is a serial loop and extra steps are pure overhead.
        if num_blocks == 1:
            block_rows = _round_up(_cdiv(total_rows, 2), sublane)
        elif num_blocks % 2 == 1 and num_blocks <= 16:
            block_rows = _round_up(_cdiv(total_rows, num_blocks + 1), sublane)
        block_rows = max(block_rows, sublane)
        num_blocks = _cdiv(total_rows, block_rows)

    block_bytes = block_rows * _LANE * itemsize
    # In-flight VMEM ~= double-buffered input + output = 4 x block_bytes,
    # plus slack for Mosaic internal scratch. Cap well under v7x's 64 MiB.
    vmem_limit = int(min(max(4 * block_bytes + (8 << 20), 16 << 20), 48 << 20))

    scale_arr = scale_f32.reshape(1)

    out2d = pl.pallas_call(
        _scale_kernel,
        out_shape=jax.ShapeDtypeStruct((total_rows, _LANE), dtype),
        grid=(num_blocks,),
        in_specs=[
            pl.BlockSpec(memory_space=pltpu.SMEM),                # scale
            pl.BlockSpec((block_rows, _LANE), lambda i: (i, 0)),  # x tile
        ],
        out_specs=pl.BlockSpec((block_rows, _LANE), lambda i: (i, 0)),
        compiler_params=pltpu.CompilerParams(
            dimension_semantics=("parallel",),
            vmem_limit_bytes=vmem_limit,
        ),
        cost_estimate=pl.CostEstimate(
            flops=n, transcendentals=0, bytes_accessed=2 * n * itemsize
        ),
    )(scale_arr, x2d)

    return out2d.reshape(orig_shape)


if __name__ == "__main__":
    key = jax.random.PRNGKey(0)

    # NCHW input, small shape — matches the PyTorch module's usage. Force the
    # Pallas path (min_pallas_bytes=0) so the kernel itself is exercised even
    # though production would take the tiny-tensor fast path here.
    x = jax.random.normal(key, (2, 4, 16, 16), dtype=jnp.float32)
    scale = jnp.array(1.0, dtype=jnp.float32)   # nn.Parameter(torch.tensor(1.0))
    y = scaling_operator(x, scale, min_pallas_bytes=0)
    jax.block_until_ready(y)
    assert y.shape == x.shape and y.dtype == x.dtype
    assert jnp.allclose(y, x * scale, atol=0.0, rtol=0.0)

    # Modest 128-aligned tensor through the default (Pallas) path, scale != 1.
    x2 = jax.random.normal(jax.random.PRNGKey(1), (8, 16, 32, 32), dtype=jnp.float32)
    scale2 = jnp.array(0.5, dtype=jnp.float32)
    y2 = scaling_operator(x2, scale2)
    jax.block_until_ready(y2)
    assert y2.shape == x2.shape and y2.dtype == x2.dtype
    assert jnp.allclose(y2, x2 * scale2)

    # Ragged flat size -> single-pass XLA fallback (no pad/slice extra passes).
    x3 = jax.random.normal(jax.random.PRNGKey(2), (3, 7, 11), dtype=jnp.float32)
    y3 = scaling_operator(x3, jnp.array(2.0, dtype=jnp.float32), min_pallas_bytes=0)
    jax.block_until_ready(y3)
    assert y3.shape == x3.shape and jnp.allclose(y3, x3 * 2.0)

    # Tiny-tensor fast path (plain JAX).
    x4 = jax.random.normal(jax.random.PRNGKey(3), (2, 4, 16, 16), dtype=jnp.float32)
    y4 = scaling_operator(x4, jnp.array(3.0, dtype=jnp.float32))
    jax.block_until_ready(y4)
    assert y4.shape == x4.shape and jnp.allclose(y4, x4 * 3.0)

    print("KERNEL_OK")
</pallas_src>

<mosaic_0001>
module attributes {stable_mosaic.version = 11 : i64} {
  func.func @_scale_kernel(%arg0: i32, %arg1: memref<1xf32, #tpu.memory_space<smem>>, %arg2: memref<16x128xf32, #tpu.memory_space<vmem>>, %arg3: memref<16x128xf32, #tpu.memory_space<vmem>>) attributes {dimension_semantics = [#tpu.dimension_semantics<parallel>], iteration_bounds = array<i64: 1>, scalar_prefetch = 0 : i64, scratch_operands = 0 : i64, tpu.core_type = #tpu.core_type<tc>, window_params = [{transform_indices = @transform_0, window_bounds = array<i64: 1>}, {transform_indices = @transform_1, window_bounds = array<i64: 16, 128>}, {transform_indices = @transform_2, window_bounds = array<i64: 16, 128>}]} {
    %c0 = arith.constant 0 : index
    %c0_0 = arith.constant 0 : index
    %0 = vector.load %arg2[%c0, %c0_0] : memref<16x128xf32, #tpu.memory_space<vmem>>, vector<16x128xf32>
    %c0_1 = arith.constant 0 : index
    %1 = memref.load %arg1[%c0_1] : memref<1xf32, #tpu.memory_space<smem>>
    %2 = vector.broadcast %1 : f32 to vector<16x128xf32>
    %3 = arith.mulf %0, %2 : vector<16x128xf32>
    %c0_2 = arith.constant 0 : index
    %c0_3 = arith.constant 0 : index
    %4 = vector.load %arg3[%c0_2, %c0_3] : memref<16x128xf32, #tpu.memory_space<vmem>>, vector<16x128xf32>
    tpu.vector_store %arg3[%c0_2, %c0_3], %3 {strides = array<i32>} : memref<16x128xf32, #tpu.memory_space<vmem>>, vector<16x128xf32>,
    return
  }
  func.func @transform_0(%arg0: i32) -> i32 {
    %c0_i32 = arith.constant 0 : i32
    %c0_i32_0 = arith.constant 0 : i32
    return %c0_i32 : i32
  }
  func.func @transform_1(%arg0: i32) -> (i32, i32) {
    %c0_i32 = arith.constant 0 : i32
    %c0_i32_0 = arith.constant 0 : i32
    return %arg0, %c0_i32 : i32, i32
  }
  func.func @transform_2(%arg0: i32) -> (i32, i32) {
    %c0_i32 = arith.constant 0 : i32
    %c0_i32_0 = arith.constant 0 : i32
    return %arg0, %c0_i32 : i32, i32
  }
}

</mosaic_0001>

<llo_original>
// kernel: tpu_custom_call.1
$region0: #{tpu_custom_call.1}
  #allocation0 [shape = 'u32[]', space=smem, size = 0x4, offset = 0x4, fixed_abs, tag = 'smem constant byte address 0x4 - core index']
  #allocation1 [shape = 'u32[144,128]{1,0:T(1,128)}', space=vmem, size = 0x12000, scoped, tag = 'internal scratch']
  #allocation2 [shape = 'f32[1]{0:T(128)S(6)}', space=smem, size = 0x200, scoped, tag = 'scoped memory for tpu_custom_call.1']
  %s0 = inlined_call_operand.<no memory space> [shape: f32[1], index: 0, kind: input, shape index: {}]
  %s1 = inlined_call_operand.hbm [shape: f32[16,128], index: 1, kind: input, shape index: {}]
  %s2 = inlined_call_operand.hbm [shape: f32[16,128], index: 2, kind: output, shape index: {}]
  %s3 = sld [smem:[#allocation0]]
  $region22: #{tpu_custom_call.1} parent=0
    _
  %s5 = ssub.s32 1, %s3
  %s6 = scalar_select 0, %s5, %s3
  %7 = sst [smem:[#allocation2]] %s0
  $region1: #{tpu_custom_call.1} parent=0
    #allocation3 [shape = 'u8[8192]{0}', space=vmem, size = 0x2000, scoped, tag = 'input window, operand 1, single buffered']
    #allocation4 [shape = 's32[1]{0}', space=sflag, size = 0x4, scoped, tag = 'scoped memory for tpu_custom_call.1']
    #allocation5 [shape = 's32[1]{0}', space=sflag, size = 0x4, scoped, tag = 'scoped memory for tpu_custom_call.1']
    #allocation6 [shape = 'u8[8192]{0}', space=vmem, size = 0x2000, scoped, tag = 'output window, operand 0, single buffered']
    %8 = vsyncpa [#allocation4], 0
    %9 = vsyncpa [#allocation5], 0
    // Predicated region
    $region2: #{tpu_custom_call.1} parent=1 // pred_check
      _
    $region3: #{tpu_custom_call.1} parent=1 // pred_check_branch
      %11 = sbr.rel (0) target = $region5
    $region4: #{tpu_custom_call.1} parent=1 // pred_region
      _
    $region5: #{tpu_custom_call.1} parent=1 // pred_fallthru
      _
    // Predicated region
    $region6: #{tpu_custom_call.1} parent=1 // pred_check
      _
    $region7: #{tpu_custom_call.1} parent=1 // pred_check_branch
      %13 = sbr.rel (0) target = $region9
    $region8: #{tpu_custom_call.1} parent=1 // pred_region
      %s15 = ssub.s32 256, 256
      %16 = vsyncadd [#allocation4], %s15
      %s17 = sshll.u32 [#allocation3], 4
      %s18 = int_to_ptr.vmem [resolvable:$true] %s17
      %23 = dma.hbm_to_vmem [thread:$0]  %s1, 256, %s18, [#allocation4], 128, 128, 8
    $region9: #{tpu_custom_call.1} parent=1 // pred_fallthru
      _
    // Predicated region
    $region10: #{tpu_custom_call.1} parent=1 // pred_check
      _
    $region11: #{tpu_custom_call.1} parent=1 // pred_check_branch
      %25 = sbr.rel (0) target = $region13
    $region12: #{tpu_custom_call.1} parent=1 // pred_region
      %26 = dma.done [#allocation4], 256
    $region13: #{tpu_custom_call.1} parent=1 // pred_fallthru
      _
    %v27 = vld [vmem:[#allocation3] sm:$0xff]
    %v28 = vld [vmem:[#allocation3 + $0x8] sm:$0xff]
    %s29 = sld [smem:[#allocation2]]
    %v30 = vstv %s29
    %v31 = vmul.f32 %v27, %v30
    %v32 = vmul.f32 %v28, %v30
    %33 = vst [vmem:[#allocation6] sm:$0xff] %v31
    %34 = vst [vmem:[#allocation6 + $0x8] sm:$0xff] %v32
    // Predicated region
    $region14: #{tpu_custom_call.1} parent=1 // pred_check
      _
    $region15: #{tpu_custom_call.1} parent=1 // pred_check_branch
      %36 = sbr.rel (0) target = $region17
    $region16: #{tpu_custom_call.1} parent=1 // pred_region
      %s38 = ssub.s32 256, 256
      %39 = vsyncadd [#allocation5], %s38
      %s40 = sshll.u32 [#allocation6], 4
      %s41 = int_to_ptr.vmem [resolvable:$true] %s40
      %46 = dma.vmem_to_hbm [thread:$0]  %s41, 256, %s2, [#allocation5], 128, 128, 8
    $region17: #{tpu_custom_call.1} parent=1 // pred_fallthru
      _
    // Predicated region
    $region18: #{tpu_custom_call.1} parent=1 // pred_check
      _
    $region19: #{tpu_custom_call.1} parent=1 // pred_check_branch
      %48 = sbr.rel (0) target = $region21
    $region20: #{tpu_custom_call.1} parent=1 // pred_region
      %49 = dma.done [#allocation5], 256
    $region21: #{tpu_custom_call.1} parent=1 // pred_fallthru
      _
    %50 = vsyncpa [#allocation4], 1
    %51 = vsyncpa [#allocation5], 1

</llo_original>
